<compile_context>
chip_gen: v6e
topology: v6e:2x2x1
jax: 0.10.0
libtpu: 0.0.40
codegen_flags: <defaults>
</compile_context>

<pallas_src>
import functools

import jax
import jax.numpy as jnp
from jax.experimental import pallas as pl
from jax.experimental.pallas import tpu as pltpu

NUM_TOKENS = 640   # the module asserts num_tokens == 640
TILE_N = 512       # token-axis tile, sized for the smallest VMEM budget (v5e scoped / v7x)


def _group_start_width(atom_type):
    """Per-row codebook group range [start, start+width), matching the PyTorch loop
    (including its `start = end + 1` increment)."""
    a = atom_type
    start = jnp.where(a == 5, 0,
            jnp.where(a == 6, 129,
            jnp.where(a == 7, 257,
            jnp.where(a == 119, 513,
            jnp.where(a == 120, 577, 385)))))
    width = jnp.where(a == 5, 128,
            jnp.where(a == 119, 63,
            jnp.where(a == 120, 63, 127)))
    return start.astype(jnp.int32), width.astype(jnp.int32)


def _vq_kernel(start_ref, width_ref, e_ref, wt_ref, w_ref, hwsq_ref,
               q_ref, sse_ref, *, n_rows, tile_n):
    """One token tile: masked nearest-codebook search + one-hot lookup + SSE partial."""
    e = e_ref[...].astype(jnp.float32)                       # (tn, d)
    tn = e.shape[0]
    K = w_ref.shape[0]

    # score = e.w^T - 0.5*||w||^2 ; argmax(score) == argmin(||e - w||^2)
    # (the per-row ||e||^2 term is dropped since it does not affect the argmin).
    dots = jnp.dot(e, wt_ref[...], preferred_element_type=jnp.float32)    # (tn, K) MXU
    score = dots - hwsq_ref[...]                                          # (tn, K)

    # Mask codebook columns outside this row's group range with one unsigned compare:
    # valid <=> 0 <= col - start < width.
    col = jax.lax.broadcasted_iota(jnp.int32, (tn, K), 1)
    delta = (col - start_ref[...]).astype(jnp.uint32)
    valid = delta < width_ref[...].astype(jnp.uint32)
    score = jnp.where(valid, score, -jnp.inf)

    # argmax with torch-style first-occurrence tie-break, kept 2-D for TPU.
    best = jnp.max(score, axis=1, keepdims=True)                          # (tn, 1)
    idx = jnp.min(jnp.where(score == best, col, K), axis=1, keepdims=True)

    # Quantize = one-hot @ codebook (embedding lookup on the MXU).
    onehot = (col == idx).astype(jnp.float32)                             # (tn, K)
    quantized = jnp.dot(onehot, w_ref[...], preferred_element_type=jnp.float32)
    q_ref[...] = quantized.astype(q_ref.dtype)

    # Per-tile sum of squared errors; rows past n_rows (padding) are masked out.
    row = (jax.lax.broadcasted_iota(jnp.int32, (tn, 1), 0)
           + pl.program_id(0) * tile_n)
    rmask = (row < n_rows).astype(jnp.float32)                            # (tn, 1)
    diff = (quantized - e) * rmask
    sse_ref[...] = jnp.sum(diff * diff) + jnp.zeros_like(sse_ref)


def vector_quantizer_forward(x, e, embeddings, beta, tile_n=TILE_N):
    """Pallas-backed equivalent of VectorQuantizer.forward (forward values).

    Args:
      x: (n, 2) int32, column 0 is the atom type.
      e: (n, d) float32 encoder embeddings.
      embeddings: (640, d) float32 codebook (nn.Embedding weight).
      beta: scalar loss weighting.
    Returns:
      (quantized (n, d), loss dict) matching the PyTorch forward values.
    """
    n, d = e.shape
    K = embeddings.shape[0]
    assert K == NUM_TOKENS

    # Hoist all constant / per-row scalar work out of the kernel.
    start, width = _group_start_width(x[:, 0:1].astype(jnp.int32))        # (n, 1) each
    w = embeddings.astype(jnp.float32)                                    # (K, d)
    wt = w.T                                                              # (d, K) lane-dense
    half_w_sq = (0.5 * jnp.sum(w * w, axis=1))[None, :]                   # (1, K)

    # Tile the token axis; pad to a multiple of tile_n.  Padded rows use the
    # "others" group so the masked argmax stays well-defined; they are masked
    # out of the SSE and sliced off the output.
    tile_n = min(tile_n, max(8, -(-n // 8) * 8))
    n_pad = pl.cdiv(n, tile_n) * tile_n
    num_tiles = n_pad // tile_n
    pad = n_pad - n
    e_in = e
    if pad:
        e_in = jnp.pad(e, ((0, pad), (0, 0)))
        start = jnp.pad(start, ((0, pad), (0, 0)), constant_values=385)
        width = jnp.pad(width, ((0, pad), (0, 0)), constant_values=127)

    kernel = functools.partial(_vq_kernel, n_rows=n, tile_n=tile_n)
    q_pad, sse = pl.pallas_call(
        kernel,
        grid=(num_tiles,),
        in_specs=[
            pl.BlockSpec((tile_n, 1), lambda i: (i, 0)),   # start
            pl.BlockSpec((tile_n, 1), lambda i: (i, 0)),   # width
            pl.BlockSpec((tile_n, d), lambda i: (i, 0)),   # e tile
            pl.BlockSpec((d, K), lambda i: (0, 0)),        # codebook^T (resident)
            pl.BlockSpec((K, d), lambda i: (0, 0)),        # codebook   (resident)
            pl.BlockSpec((1, K), lambda i: (0, 0)),        # 0.5*||w||^2 (resident)
        ],
        out_specs=[
            pl.BlockSpec((tile_n, d), lambda i: (i, 0)),   # quantized tile
            pl.BlockSpec((1, 8, 128), lambda i: (i, 0, 0)),  # per-tile SSE partial
        ],
        out_shape=[
            jax.ShapeDtypeStruct((n_pad, d), e.dtype),
            jax.ShapeDtypeStruct((num_tiles, 8, 128), jnp.float32),
        ],
        compiler_params=pltpu.CompilerParams(
            dimension_semantics=("parallel",)),
    )(start, width, e_in, wt, w, half_w_sq)

    quantized = q_pad[:n]
    mse = jnp.sum(sse[:, 0, 0]) / (n * d)
    # Forward values of both MSE losses are identical (they differ only in which
    # argument is detached, i.e. only in gradients).
    codebook_loss = mse
    gnn_loss = mse
    vq_loss = codebook_loss + beta * gnn_loss
    # TODO(synk): .detach() / straight-through-estimator gradient semantics are not
    # representable in a pure forward kernel; forward value of e + (q - e).detach()
    # is exactly `quantized`, which is what we return.
    return quantized, {
        "codebook_vq_loss": codebook_loss,
        "gnn_vq_loss": gnn_loss,
        "total_vq_loss": vq_loss,
    }


def _reference_forward(x, e, embeddings, beta):
    """Pure-JAX reference mirroring the PyTorch code (full-precision matmul)."""
    start, width = _group_start_width(x[:, 0].astype(jnp.int32))          # (n,)
    dist = (jnp.sum(e ** 2, axis=1, keepdims=True)
            + jnp.sum(embeddings ** 2, axis=1)[None, :]
            - 2.0 * jnp.dot(e, embeddings.T, precision=jax.lax.Precision.HIGHEST))
    col = jnp.arange(embeddings.shape[0])[None, :]
    valid = (col >= start[:, None]) & (col < (start + width)[:, None])
    dist = jnp.where(valid, dist, jnp.inf)
    idx = jnp.argmin(dist, axis=1)
    q = embeddings[idx]
    mse = jnp.mean((q - e) ** 2)
    return q, {"codebook_vq_loss": mse, "gnn_vq_loss": mse,
               "total_vq_loss": mse + beta * mse}


if __name__ == "__main__":
    key = jax.random.PRNGKey(0)
    k_e, k_w, k_e2, k_a2 = jax.random.split(key, 4)

    beta = 0.25
    d = 32
    # nn.Embedding default init is N(0, 1).
    embeddings = jax.random.normal(k_w, (NUM_TOKENS, d), dtype=jnp.float32)

    # --- small test: single tile, every atom-type group represented ---
    atom_types = jnp.array([5, 6, 7, 119, 120, 1, 6, 35], dtype=jnp.int32)
    x = jnp.stack([atom_types, jnp.zeros_like(atom_types)], axis=1)       # (8, 2)
    e = jax.random.normal(k_e, (8, d), dtype=jnp.float32)                 # (8, 32)

    quantized, losses = vector_quantizer_forward(x, e, embeddings, beta)
    jax.block_until_ready((quantized, losses))
    q_ref, losses_ref = _reference_forward(x, e, embeddings, beta)
    assert jnp.allclose(quantized, q_ref, rtol=1e-5, atol=1e-5)
    for name in losses:
        assert jnp.allclose(losses[name], losses_ref[name], rtol=1e-4, atol=1e-6)

    # --- larger test: exercises multiple token tiles + the padding path ---
    n2 = 777
    pool = jnp.array([5, 6, 7, 119, 120, 1, 8, 15, 35], dtype=jnp.int32)
    atoms2 = jax.random.choice(k_a2, pool, shape=(n2,))
    x2 = jnp.stack([atoms2, jnp.zeros_like(atoms2)], axis=1)              # (777, 2)
    e2 = jax.random.normal(k_e2, (n2, d), dtype=jnp.float32)              # (777, 32)

    q2, losses2 = vector_quantizer_forward(x2, e2, embeddings, beta)
    jax.block_until_ready((q2, losses2))
    q2_ref, losses2_ref = _reference_forward(x2, e2, embeddings, beta)
    row_ok = jnp.all(jnp.abs(q2 - q2_ref) <= 1e-4, axis=1)
    # Allow extremely rare FP tie-break flips on near-equal distances.
    assert jnp.mean(row_ok.astype(jnp.float32)) >= 0.995
    assert jnp.allclose(losses2["total_vq_loss"], losses2_ref["total_vq_loss"],
                        rtol=1e-4, atol=1e-6)

    print("KERNEL_OK")
</pallas_src>

<mosaic_0001>
module attributes {stable_mosaic.version = 11 : i64} {
  func.func @_vq_kernel(%arg0: i32, %arg1: memref<8x1xi32, #tpu.memory_space<vmem>>, %arg2: memref<8x1xi32, #tpu.memory_space<vmem>>, %arg3: memref<8x32xf32, #tpu.memory_space<vmem>>, %arg4: memref<32x640xf32, #tpu.memory_space<vmem>>, %arg5: memref<640x32xf32, #tpu.memory_space<vmem>>, %arg6: memref<1x640xf32, #tpu.memory_space<vmem>>, %arg7: memref<8x32xf32, #tpu.memory_space<vmem>>, %arg8: memref<1x8x128xf32, #tpu.memory_space<vmem>>) attributes {dimension_semantics = [#tpu.dimension_semantics<parallel>], iteration_bounds = array<i64: 1>, scalar_prefetch = 0 : i64, scratch_operands = 0 : i64, tpu.core_type = #tpu.core_type<tc>, window_params = [{transform_indices = @transform_0, window_bounds = array<i64: 8, 1>}, {transform_indices = @transform_1, window_bounds = array<i64: 8, 1>}, {transform_indices = @transform_2, window_bounds = array<i64: 8, 32>}, {pipeline_mode = #tpu.pipeline_mode<synchronous>, transform_indices = @transform_3, window_bounds = array<i64: 32, 640>}, {pipeline_mode = #tpu.pipeline_mode<synchronous>, transform_indices = @transform_4, window_bounds = array<i64: 640, 32>}, {pipeline_mode = #tpu.pipeline_mode<synchronous>, transform_indices = @transform_5, window_bounds = array<i64: 1, 640>}, {transform_indices = @transform_6, window_bounds = array<i64: 8, 32>}, {transform_indices = @transform_7, window_bounds = array<i64: 1, 8, 128>}]} {
    %c0 = arith.constant 0 : index
    %c0_0 = arith.constant 0 : index
    %0 = vector.load %arg3[%c0, %c0_0] : memref<8x32xf32, #tpu.memory_space<vmem>>, vector<8x32xf32>
    %c0_1 = arith.constant 0 : index
    %c0_2 = arith.constant 0 : index
    %1 = vector.load %arg4[%c0_1, %c0_2] : memref<32x640xf32, #tpu.memory_space<vmem>>, vector<32x640xf32>
    %cst = arith.constant dense<0.000000e+00> : vector<8x640xf32>
    %2 = tpu.matmul %0, %1, %cst {dimension_numbers = #tpu.dot_dimension_numbers<[1], [0], [0], [1], [0, 0, 1, 1], [], []>} : vector<8x32xf32>, vector<32x640xf32>, vector<8x640xf32> -> vector<8x640xf32>
    %c0_3 = arith.constant 0 : index
    %c0_4 = arith.constant 0 : index
    %3 = vector.load %arg6[%c0_3, %c0_4] : memref<1x640xf32, #tpu.memory_space<vmem>>, vector<1x640xf32>
    %4 = vector.broadcast %3 : vector<1x640xf32> to vector<8x640xf32>
    %5 = arith.subf %2, %4 : vector<8x640xf32>
    %6 = tpu.iota {dimensions = array<i32: 1>} : vector<8x640xi32>
    %c0_5 = arith.constant 0 : index
    %c0_6 = arith.constant 0 : index
    %7 = vector.load %arg1[%c0_5, %c0_6] : memref<8x1xi32, #tpu.memory_space<vmem>>, vector<8x1xi32>
    %8 = vector.broadcast %7 : vector<8x1xi32> to vector<8x640xi32>
    %9 = arith.subi %6, %8 : vector<8x640xi32>
    %c0_7 = arith.constant 0 : index
    %c0_8 = arith.constant 0 : index
    %10 = vector.load %arg2[%c0_7, %c0_8] : memref<8x1xi32, #tpu.memory_space<vmem>>, vector<8x1xi32>
    %11 = vector.broadcast %10 : vector<8x1xi32> to vector<8x640xi32>
    %12 = arith.cmpi ult, %9, %11 : vector<8x640xi32>
    %cst_9 = arith.constant 0xFF800000 : f32
    %13 = vector.broadcast %cst_9 : f32 to vector<8x640xf32>
    %14 = arith.select %12, %5, %13 : vector<8x640xi1>, vector<8x640xf32>
    %cst_10 = arith.constant dense<0xFF800000> : vector<8xf32>
    %15 = vector.multi_reduction <maximumf>, %14, %cst_10 [1] : vector<8x640xf32> to vector<8xf32>
    %16 = vector.shape_cast %15 : vector<8xf32> to vector<8x1xf32>
    %17 = vector.broadcast %16 : vector<8x1xf32> to vector<8x640xf32>
    %18 = arith.cmpf oeq, %14, %17 : vector<8x640xf32>
    %c640_i32 = arith.constant 640 : i32
    %19 = vector.broadcast %c640_i32 : i32 to vector<8x640xi32>
    %20 = arith.select %18, %6, %19 : vector<8x640xi1>, vector<8x640xi32>
    %cst_11 = arith.constant dense<2147483647> : vector<8xi32>
    %21 = vector.multi_reduction <minsi>, %20, %cst_11 [1] : vector<8x640xi32> to vector<8xi32>
    %22 = vector.shape_cast %21 : vector<8xi32> to vector<8x1xi32>
    %23 = vector.broadcast %22 : vector<8x1xi32> to vector<8x640xi32>
    %24 = arith.cmpi eq, %6, %23 : vector<8x640xi32>
    %25 = arith.extui %24 : vector<8x640xi1> to vector<8x640xi32>
    %26 = arith.sitofp %25 : vector<8x640xi32> to vector<8x640xf32>
    %c0_12 = arith.constant 0 : index
    %c0_13 = arith.constant 0 : index
    %27 = vector.load %arg5[%c0_12, %c0_13] : memref<640x32xf32, #tpu.memory_space<vmem>>, vector<640x32xf32>
    %cst_14 = arith.constant dense<0.000000e+00> : vector<8x32xf32>
    %28 = tpu.matmul %26, %27, %cst_14 {dimension_numbers = #tpu.dot_dimension_numbers<[1], [0], [0], [1], [0, 0, 1, 1], [], []>} : vector<8x640xf32>, vector<640x32xf32>, vector<8x32xf32> -> vector<8x32xf32>
    %c0_15 = arith.constant 0 : index
    %c0_16 = arith.constant 0 : index
    %29 = vector.load %arg7[%c0_15, %c0_16] : memref<8x32xf32, #tpu.memory_space<vmem>>, vector<8x32xf32>
    tpu.vector_store %arg7[%c0_15, %c0_16], %28 {strides = array<i32>} : memref<8x32xf32, #tpu.memory_space<vmem>>, vector<8x32xf32>,
    %30 = tpu.iota {dimensions = array<i32: 0>} : vector<8x1xi32>
    %c8_i32 = arith.constant 8 : i32
    %31 = arith.muli %arg0, %c8_i32 : i32
    %32 = vector.broadcast %31 : i32 to vector<8x1xi32>
    %33 = arith.addi %30, %32 : vector<8x1xi32>
    %c8_i32_17 = arith.constant 8 : i32
    %34 = vector.broadcast %c8_i32_17 : i32 to vector<8x1xi32>
    %35 = arith.cmpi slt, %33, %34 : vector<8x1xi32>
    %36 = arith.extui %35 : vector<8x1xi1> to vector<8x1xi32>
    %37 = arith.sitofp %36 : vector<8x1xi32> to vector<8x1xf32>
    %38 = arith.subf %28, %0 : vector<8x32xf32>
    %39 = vector.broadcast %37 : vector<8x1xf32> to vector<8x32xf32>
    %40 = arith.mulf %38, %39 : vector<8x32xf32>
    %41 = arith.mulf %40, %40 : vector<8x32xf32>
    %42 = vector.shape_cast %41 : vector<8x32xf32> to vector<1x8x32xf32>
    %cst_18 = arith.constant dense<0.000000e+00> : vector<1xf32>
    %43 = vector.multi_reduction <add>, %42, %cst_18 [1, 2] : vector<1x8x32xf32> to vector<1xf32>
    %44 = vector.shape_cast %43 : vector<1xf32> to vector<1x1x1xf32>
    %45 = vector.extract %44[0, 0, 0] : f32 from vector<1x1x1xf32>
    %cst_19 = arith.constant 0.000000e+00 : f32
    %46 = vector.broadcast %cst_19 : f32 to vector<1x8x128xf32>
    %47 = vector.broadcast %45 : f32 to vector<1x8x128xf32>
    %48 = arith.addf %47, %46 : vector<1x8x128xf32>
    %c0_20 = arith.constant 0 : index
    %c0_21 = arith.constant 0 : index
    %c0_22 = arith.constant 0 : index
    %49 = vector.load %arg8[%c0_20, %c0_21, %c0_22] : memref<1x8x128xf32, #tpu.memory_space<vmem>>, vector<1x8x128xf32>
    tpu.vector_store %arg8[%c0_20, %c0_21, %c0_22], %48 {strides = array<i32>} : memref<1x8x128xf32, #tpu.memory_space<vmem>>, vector<1x8x128xf32>,
    return
  }
  func.func @transform_0(%arg0: i32) -> (i32, i32) {
    %c0_i32 = arith.constant 0 : i32
    %c0_i32_0 = arith.constant 0 : i32
    return %arg0, %c0_i32 : i32, i32
  }
  func.func @transform_1(%arg0: i32) -> (i32, i32) {
    %c0_i32 = arith.constant 0 : i32
    %c0_i32_0 = arith.constant 0 : i32
    return %arg0, %c0_i32 : i32, i32
  }
  func.func @transform_2(%arg0: i32) -> (i32, i32) {
    %c0_i32 = arith.constant 0 : i32
    %c0_i32_0 = arith.constant 0 : i32
    return %arg0, %c0_i32 : i32, i32
  }
  func.func @transform_3(%arg0: i32) -> (i32, i32) {
    %c0_i32 = arith.constant 0 : i32
    %c0_i32_0 = arith.constant 0 : i32
    %c0_i32_1 = arith.constant 0 : i32
    return %c0_i32, %c0_i32_0 : i32, i32
  }
  func.func @transform_4(%arg0: i32) -> (i32, i32) {
    %c0_i32 = arith.constant 0 : i32
    %c0_i32_0 = arith.constant 0 : i32
    %c0_i32_1 = arith.constant 0 : i32
    return %c0_i32, %c0_i32_0 : i32, i32
  }
  func.func @transform_5(%arg0: i32) -> (i32, i32) {
    %c0_i32 = arith.constant 0 : i32
    %c0_i32_0 = arith.constant 0 : i32
    %c0_i32_1 = arith.constant 0 : i32
    return %c0_i32, %c0_i32_0 : i32, i32
  }
  func.func @transform_6(%arg0: i32) -> (i32, i32) {
    %c0_i32 = arith.constant 0 : i32
    %c0_i32_0 = arith.constant 0 : i32
    return %arg0, %c0_i32 : i32, i32
  }
  func.func @transform_7(%arg0: i32) -> (i32, i32, i32) {
    %c0_i32 = arith.constant 0 : i32
    %c0_i32_0 = arith.constant 0 : i32
    %c0_i32_1 = arith.constant 0 : i32
    return %arg0, %c0_i32, %c0_i32_0 : i32, i32, i32
  }
}

</mosaic_0001>

<llo_original>
// kernel: tpu_custom_call.1
$region0: #{tpu_custom_call.1}
  #allocation0 [shape = 'u32[]', space=smem, size = 0x4, offset = 0x4, fixed_abs, tag = 'smem constant byte address 0x4 - core index']
  #allocation1 [shape = 'u32[144,128]{1,0:T(1,128)}', space=vmem, size = 0x12000, scoped, tag = 'internal scratch']
  %s0 = inlined_call_operand.vmem [shape: s32[8,1], index: 0, kind: input, shape index: {}]
  %s1 = inlined_call_operand.vmem [shape: s32[8,1], index: 1, kind: input, shape index: {}]
  %s2 = inlined_call_operand.vmem [shape: f32[8,32], index: 2, kind: input, shape index: {}]
  %s3 = inlined_call_operand.vmem [shape: f32[32,640], index: 3, kind: input, shape index: {}]
  %s4 = inlined_call_operand.vmem [shape: f32[640,32], index: 4, kind: input, shape index: {}]
  %s5 = inlined_call_operand.vmem [shape: f32[1,640], index: 5, kind: input, shape index: {}]
  %s6 = inlined_call_operand.hbm [shape: f32[8,32], index: 6, kind: output, shape index: {0}]
  %s7 = inlined_call_operand.hbm [shape: f32[1,8,128], index: 7, kind: output, shape index: {1}]
  %8 = xla_tuple %s6, %s7
  %s9 = sld [smem:[#allocation0]]
  $region42: #{tpu_custom_call.1} parent=0
    _
  %s11 = ssub.s32 1, %s9
  %s12 = scalar_select 0, %s11, %s9
  $region1: #{tpu_custom_call.1} parent=0
    #allocation2 [shape = 'u8[4096]{0}', space=vmem, size = 0x1000, scoped, tag = 'output window, operand 0, single buffered']
    #allocation3 [shape = 's32[1]{0}', space=sflag, size = 0x4, scoped, tag = 'scoped memory for tpu_custom_call.1']
    #allocation4 [shape = 'u8[4096]{0}', space=vmem, size = 0x1000, scoped, tag = 'output window, operand 1, single buffered']
    #allocation5 [shape = 's32[1]{0}', space=sflag, size = 0x4, scoped, tag = 'scoped memory for tpu_custom_call.1']
    %13 = vsyncpa [#allocation3], 0
    %14 = vsyncpa [#allocation5], 0
    // Predicated region
    $region2: #{tpu_custom_call.1} parent=1 // pred_check
      _
    $region3: #{tpu_custom_call.1} parent=1 // pred_check_branch
      %16 = sbr.rel (0) target = $region5
    $region4: #{tpu_custom_call.1} parent=1 // pred_region
      _
    $region5: #{tpu_custom_call.1} parent=1 // pred_fallthru
      _
    // Predicated region
    $region6: #{tpu_custom_call.1} parent=1 // pred_check
      _
    $region7: #{tpu_custom_call.1} parent=1 // pred_check_branch
      %18 = sbr.rel (0) target = $region9
    $region8: #{tpu_custom_call.1} parent=1 // pred_region
      _
    $region9: #{tpu_custom_call.1} parent=1 // pred_fallthru
      _
    // Predicated region
    $region10: #{tpu_custom_call.1} parent=1 // pred_check
      _
    $region11: #{tpu_custom_call.1} parent=1 // pred_check_branch
      %20 = sbr.rel (0) target = $region13
    $region12: #{tpu_custom_call.1} parent=1 // pred_region
      _
    $region13: #{tpu_custom_call.1} parent=1 // pred_fallthru
      _
    // Predicated region
    $region14: #{tpu_custom_call.1} parent=1 // pred_check
      _
    $region15: #{tpu_custom_call.1} parent=1 // pred_check_branch
      %22 = sbr.rel (0) target = $region17
    $region16: #{tpu_custom_call.1} parent=1 // pred_region
      _
    $region17: #{tpu_custom_call.1} parent=1 // pred_fallthru
      _
    // Predicated region
    $region18: #{tpu_custom_call.1} parent=1 // pred_check
      _
    $region19: #{tpu_custom_call.1} parent=1 // pred_check_branch
      %24 = sbr.rel (0) target = $region21
    $region20: #{tpu_custom_call.1} parent=1 // pred_region
      _
    $region21: #{tpu_custom_call.1} parent=1 // pred_fallthru
      _
    // Predicated region
    $region22: #{tpu_custom_call.1} parent=1 // pred_check
      _
    $region23: #{tpu_custom_call.1} parent=1 // pred_check_branch
      %26 = sbr.rel (0) target = $region25
    $region24: #{tpu_custom_call.1} parent=1 // pred_region
      _
    $region25: #{tpu_custom_call.1} parent=1 // pred_fallthru
      _
    %v27 = vld [vmem:[%s2] sm:$0xff]
    %v28 = vld [vmem:[%s3] sm:$0xff]
    %v29 = vld [vmem:[%s3 + $0x8] sm:$0xff]
    %v30 = vld [vmem:[%s3 + $0x10] sm:$0xff]
    %v31 = vld [vmem:[%s3 + $0x18] sm:$0xff]
    %v32 = vld [vmem:[%s3 + $0x20] sm:$0xff]
    %v33 = vld [vmem:[%s3 + $0x28] sm:$0xff]
    %v34 = vld [vmem:[%s3 + $0x30] sm:$0xff]
    %v35 = vld [vmem:[%s3 + $0x38] sm:$0xff]
    %v36 = vld [vmem:[%s3 + $0x40] sm:$0xff]
    %v37 = vld [vmem:[%s3 + $0x48] sm:$0xff]
    %v38 = vld [vmem:[%s3 + $0x50] sm:$0xff]
    %v39 = vld [vmem:[%s3 + $0x58] sm:$0xff]
    %v40 = vld [vmem:[%s3 + $0x60] sm:$0xff]
    %v41 = vld [vmem:[%s3 + $0x68] sm:$0xff]
    %v42 = vld [vmem:[%s3 + $0x70] sm:$0xff]
    %v43 = vld [vmem:[%s3 + $0x78] sm:$0xff]
    %v44 = vld [vmem:[%s3 + $0x80] sm:$0xff]
    %v45 = vld [vmem:[%s3 + $0x88] sm:$0xff]
    %v46 = vld [vmem:[%s3 + $0x90] sm:$0xff]
    %v47 = vld [vmem:[%s3 + $0x98] sm:$0xff]
    %vm48 = vcmask 261120
    %v50 = vsel %vm48, %v27, 0
    %52 = vmatprep.subr.mxu0 0.0
    %53 = vmatpush1.msra.mxu0 0.0
    %54 = vmatprep.subr.mxu0 0.0
    %55 = vmatpush1.msra.mxu0 0.0
    %56 = vmatprep.subr.mxu0 0.0
    %57 = vmatpush1.msra.mxu0 0.0
    %58 = vmatprep.subr.mxu0 0.0
    %59 = vmatpush1.msra.mxu0 0.0
    %60 = vmatprep.subr.mxu0 0.0
    %61 = vmatpush1.msra.mxu0 0.0
    %62 = vmatprep.subr.mxu0 0.0
    %63 = vmatpush1.msra.mxu0 0.0
    %64 = vmatprep.subr.mxu0 0.0
    %65 = vmatpush1.msra.mxu0 0.0
    %66 = vmatprep.subr.mxu0 0.0
    %67 = vmatpush1.msra.mxu0 0.0
    %68 = vmatprep.subr.mxu0 0.0
    %69 = vmatpush1.msra.mxu0 0.0
    %70 = vmatprep.subr.mxu0 0.0
    %71 = vmatpush1.msra.mxu0 0.0
    %72 = vmatprep.subr.mxu0 0.0
    %73 = vmatpush1.msra.mxu0 0.0
    %74 = vmatprep.subr.mxu0 0.0
    %75 = vmatpush1.msra.mxu0 0.0
    %76 = vmatprep.subr.mxu0 %v44
    %77 = vmatpush1.msra.mxu0 %v43
    %78 = vmatprep.subr.mxu0 %v39
    %79 = vmatpush1.msra.mxu0 %v38
    %80 = vmatprep.subr.mxu0 %v34
    %81 = vmatpush1.msra.mxu0 %v33
    %82 = vmatprep.subr.mxu0 %v29
    %83 = vmatpush1.msra.mxu0 %v28
    %84 = vmatprep.subr.mxu0 0.0
    %85 = vmatpush2.msra.mxu0 0.0
    %86 = vmatprep.subr.mxu0 0.0
    %87 = vmatpush2.msra.mxu0 0.0
    %88 = vmatprep.subr.mxu0 0.0
    %89 = vmatpush2.msra.mxu0 0.0
    %90 = vmatprep.subr.mxu0 0.0
    %91 = vmatpush2.msra.mxu0 0.0
    %92 = vmatprep.subr.mxu0 0.0
    %93 = vmatpush2.msra.mxu0 0.0
    %94 = vmatprep.subr.mxu0 0.0
    %95 = vmatpush2.msra.mxu0 0.0
    %96 = vmatprep.subr.mxu0 0.0
    %97 = vmatpush2.msra.mxu0 0.0
    %98 = vmatprep.subr.mxu0 0.0
    %99 = vmatpush2.msra.mxu0 0.0
    %100 = vmatprep.subr.mxu0 0.0
    %101 = vmatpush2.msra.mxu0 0.0
    %102 = vmatprep.subr.mxu0 0.0
    %103 = vmatpush2.msra.mxu0 0.0
    %104 = vmatprep.subr.mxu0 0.0
    %105 = vmatpush2.msra.mxu0 0.0
    %106 = vmatprep.subr.mxu0 0.0
    %107 = vmatpush2.msra.mxu0 0.0
    %108 = vmatprep.subr.mxu0 0.0
    %109 = vmatpush2.msra.mxu0 0.0
    %110 = vmatprep.subr.mxu0 0.0
    %111 = vmatpush2.msra.mxu0 0.0
    %112 = vmatprep.subr.mxu0 0.0
    %113 = vmatpush2.msra.mxu0 0.0
    %114 = vmatprep.subr.mxu0 0.0
    %115 = vmatpush2.msra.mxu0 0.0
    %116 = vmatprep.mubr.f32.mxu0 0.0
    %117 = vmatmul.mubr.f32.gmra.mxu0 %v50
    %v118 = vpop.f32.mrf.mxu0
    %v119 = vadd.f32 0.0, %v118
    %v120 = vpop.f32.mrf.mxu0
    %v121 = vadd.f32 0.0, %v120
    %122 = vdwg.mxu0
    %123 = vmatprep.subr.mxu0 0.0
    %124 = vmatpush1.msra.mxu0 0.0
    %125 = vmatprep.subr.mxu0 0.0
    %126 = vmatpush1.msra.mxu0 0.0
    %127 = vmatprep.subr.mxu0 0.0
    %128 = vmatpush1.msra.mxu0 0.0
    %129 = vmatprep.subr.mxu0 0.0
    %130 = vmatpush1.msra.mxu0 0.0
    %131 = vmatprep.subr.mxu0 0.0
    %132 = vmatpush1.msra.mxu0 0.0
    %133 = vmatprep.subr.mxu0 0.0
    %134 = vmatpush1.msra.mxu0 0.0
    %135 = vmatprep.subr.mxu0 0.0
    %136 = vmatpush1.msra.mxu0 0.0
    %137 = vmatprep.subr.mxu0 0.0
    %138 = vmatpush1.msra.mxu0 0.0
    %139 = vmatprep.subr.mxu0 0.0
    %140 = vmatpush1.msra.mxu0 0.0
    %141 = vmatprep.subr.mxu0 0.0
    %142 = vmatpush1.msra.mxu0 0.0
    %143 = vmatprep.subr.mxu0 0.0
    %144 = vmatpush1.msra.mxu0 0.0
    %145 = vmatprep.subr.mxu0 0.0
    %146 = vmatpush1.msra.mxu0 0.0
    %147 = vmatprep.subr.mxu0 %v46
    %148 = vmatpush1.msra.mxu0 %v45
    %149 = vmatprep.subr.mxu0 %v41
    %150 = vmatpush1.msra.mxu0 %v40
    %151 = vmatprep.subr.mxu0 %v36
    %152 = vmatpush1.msra.mxu0 %v35
    %153 = vmatprep.subr.mxu0 %v31
    %154 = vmatpush1.msra.mxu0 %v30
    %155 = vmatprep.subr.mxu0 0.0
    %156 = vmatpush2.msra.mxu0 0.0
    %157 = vmatprep.subr.mxu0 0.0
    %158 = vmatpush2.msra.mxu0 0.0
    %159 = vmatprep.subr.mxu0 0.0
    %160 = vmatpush2.msra.mxu0 0.0
    %161 = vmatprep.subr.mxu0 0.0
    %162 = vmatpush2.msra.mxu0 0.0
    %163 = vmatprep.subr.mxu0 0.0
    %164 = vmatpush2.msra.mxu0 0.0
    %165 = vmatprep.subr.mxu0 0.0
    %166 = vmatpush2.msra.mxu0 0.0
    %167 = vmatprep.subr.mxu0 0.0
    %168 = vmatpush2.msra.mxu0 0.0
    %169 = vmatprep.subr.mxu0 0.0
    %170 = vmatpush2.msra.mxu0 0.0
    %171 = vmatprep.subr.mxu0 0.0
    %172 = vmatpush2.msra.mxu0 0.0
    %173 = vmatprep.subr.mxu0 0.0
    %174 = vmatpush2.msra.mxu0 0.0
    %175 = vmatprep.subr.mxu0 0.0
    %176 = vmatpush2.msra.mxu0 0.0
    %177 = vmatprep.subr.mxu0 0.0
    %178 = vmatpush2.msra.mxu0 0.0
    %179 = vmatprep.subr.mxu0 0.0
    %180 = vmatpush2.msra.mxu0 0.0
    %181 = vmatprep.subr.mxu0 0.0
    %182 = vmatpush2.msra.mxu0 0.0
    %183 = vmatprep.subr.mxu0 0.0
    %184 = vmatpush2.msra.mxu0 0.0
    %185 = vmatprep.subr.mxu0 0.0
    %186 = vmatpush2.msra.mxu0 0.0
    %187 = vmatprep.mubr.f32.mxu0 0.0
    %188 = vmatmul.mubr.f32.gmra.mxu0 %v50
    %v189 = vpop.f32.mrf.mxu0
    %v190 = vadd.f32 0.0, %v189
    %v191 = vpop.f32.mrf.mxu0
    %v192 = vadd.f32 0.0, %v191
    %193 = vdwg.mxu0
    %194 = vmatprep.subr.mxu0 0.0
    %195 = vmatpush1.msra.mxu0 0.0
    %196 = vmatprep.subr.mxu0 0.0
    %197 = vmatpush1.msra.mxu0 0.0
    %198 = vmatprep.subr.mxu0 0.0
    %199 = vmatpush1.msra.mxu0 0.0
    %200 = vmatprep.subr.mxu0 0.0
    %201 = vmatpush1.msra.mxu0 0.0
    %202 = vmatprep.subr.mxu0 0.0
    %203 = vmatpush1.msra.mxu0 0.0
    %204 = vmatprep.subr.mxu0 0.0
    %205 = vmatpush1.msra.mxu0 0.0
    %206 = vmatprep.subr.mxu0 0.0
    %207 = vmatpush1.msra.mxu0 0.0
    %208 = vmatprep.subr.mxu0 0.0
    %209 = vmatpush1.msra.mxu0 0.0
    %210 = vmatprep.subr.mxu0 0.0
    %211 = vmatpush1.msra.mxu0 0.0
    %212 = vmatprep.subr.mxu0 0.0
    %213 = vmatpush1.msra.mxu0 0.0
    %214 = vmatprep.subr.mxu0 0.0
    %215 = vmatpush1.msra.mxu0 0.0
    %216 = vmatprep.subr.mxu0 0.0
    %217 = vmatpush1.msra.mxu0 0.0
    %218 = vmatprep.subr.mxu0 0.0
    %219 = vmatpush1.msra.mxu0 %v47
    %220 = vmatprep.subr.mxu0 0.0
    %221 = vmatpush1.msra.mxu0 %v42
    %222 = vmatprep.subr.mxu0 0.0
    %223 = vmatpush1.msra.mxu0 %v37
    %224 = vmatprep.subr.mxu0 0.0
    %225 = vmatpush1.msra.mxu0 %v32
    %226 = vmatprep.subr.mxu0 0.0
    %227 = vmatpush2.msra.mxu0 0.0
    %228 = vmatprep.subr.mxu0 0.0
    %229 = vmatpush2.msra.mxu0 0.0
    %230 = vmatprep.subr.mxu0 0.0
    %231 = vmatpush2.msra.mxu0 0.0
    %232 = vmatprep.subr.mxu0 0.0
    %233 = vmatpush2.msra.mxu0 0.0
    %234 = vmatprep.subr.mxu0 0.0
    %235 = vmatpush2.msra.mxu0 0.0
    %236 = vmatprep.subr.mxu0 0.0
    %237 = vmatpush2.msra.mxu0 0.0
    %238 = vmatprep.subr.mxu0 0.0
    %239 = vmatpush2.msra.mxu0 0.0
    %240 = vmatprep.subr.mxu0 0.0
    %241 = vmatpush2.msra.mxu0 0.0
    %242 = vmatprep.subr.mxu0 0.0
    %243 = vmatpush2.msra.mxu0 0.0
    %244 = vmatprep.subr.mxu0 0.0
    %245 = vmatpush2.msra.mxu0 0.0
    %246 = vmatprep.subr.mxu0 0.0
    %247 = vmatpush2.msra.mxu0 0.0
    %248 = vmatprep.subr.mxu0 0.0
    %249 = vmatpush2.msra.mxu0 0.0
    %250 = vmatprep.subr.mxu0 0.0
    %251 = vmatpush2.msra.mxu0 0.0
    %252 = vmatprep.subr.mxu0 0.0
    %253 = vmatpush2.msra.mxu0 0.0
    %254 = vmatprep.subr.mxu0 0.0
    %255 = vmatpush2.msra.mxu0 0.0
    %256 = vmatprep.subr.mxu0 0.0
    %257 = vmatpush2.msra.mxu0 0.0
    %258 = vmatprep.mubr.f32.mxu0 0.0
    %259 = vmatmul.mubr.f32.gmra.mxu0 %v50
    %v260 = vpop.f32.mrf.mxu0
    %v261 = vadd.f32 0.0, %v260
    %v262 = vpop.f32.mrf.mxu0
    %263 = vdwg.mxu0
    %v264 = vld [vmem:[%s5] sm:$0x1f]
    %v266 = vlaneseq
    %v267 = vshrl.u32 %v266, 7
    %v268 = vsub.s32 0, %v267
    %v269 = vrot.slane %v264, %v268
    %v270 = vlaneseq
    %v271 = vshrl.u32 %v270, 7
    %v272 = vsub.s32 1, %v271
    %v273 = vrot.slane %v264, %v272
    %v274 = vlaneseq
    %v275 = vshrl.u32 %v274, 7
    %v276 = vsub.s32 2, %v275
    %v277 = vrot.slane %v264, %v276
    %v278 = vlaneseq
    %v279 = vshrl.u32 %v278, 7
    %v280 = vsub.s32 3, %v279
    %v281 = vrot.slane %v264, %v280
    %v282 = vlaneseq
    %v283 = vshrl.u32 %v282, 7
    %v284 = vsub.s32 4, %v283
    %v285 = vrot.slane %v264, %v284
    %v291 = vsub.f32 %v119, %v269
    %v292 = vsub.f32 %v121, %v273
    %v293 = vsub.f32 %v190, %v277
    %v294 = vsub.f32 %v192, %v281
    %v295 = vsub.f32 %v261, %v285
    %v296 = vlaneseq
    %v297 = vand.u32 %v296, 127
    %v298 = vadd.s32 %v297, 128
    %v299 = vadd.s32 %v297, 256
    %v300 = vadd.s32 %v297, 384
    %v301 = vadd.s32 %v297, 512
    %v302 = vld [vmem:[%s0] sm:$0xff]
    %303 = vset.pattern.permute.xlu0 0
    %304 = vperm.xlu0 %303, %v302
    %v305 = vpop.permute.xlu0 %304
    %v306 = vsub.s32 %v297, %v305
    %v307 = vsub.s32 %v298, %v305
    %v308 = vsub.s32 %v299, %v305
    %v309 = vsub.s32 %v300, %v305
    %v310 = vsub.s32 %v301, %v305
    %v311 = vld [vmem:[%s1] sm:$0xff]
    %312 = vset.pattern.permute.xlu0 0
    %313 = vperm.xlu0 %312, %v311
    %v314 = vpop.permute.xlu0 %313
    %vm315 = vcmp.lt.u32.totalorder %v306, %v314
    %vm316 = vcmp.lt.u32.totalorder %v307, %v314
    %vm317 = vcmp.lt.u32.totalorder %v308, %v314
    %vm318 = vcmp.lt.u32.totalorder %v309, %v314
    %vm319 = vcmp.lt.u32.totalorder %v310, %v314
    %v320 = vsel %vm315, %v291, -inf
    %v321 = vsel %vm316, %v292, -inf
    %v322 = vsel %vm317, %v293, -inf
    %v323 = vsel %vm318, %v294, -inf
    %v324 = vsel %vm319, %v295, -inf
    %v325 = vmax.f32 %v320, %v324
    %v326 = vmax.f32 %v325, %v321
    %v327 = vmax.f32 %v322, %v323
    %v328 = vmax.f32 %v326, %v327
    %329 = vmax.xlane.f32.xlu0 %v328
    %v330 = vpop.xlane.xlu0 %329
    %vm331 = vcmp.eq.f32.partialorder %v320, %v330
    %vm332 = vcmp.eq.f32.partialorder %v321, %v330
    %vm333 = vcmp.eq.f32.partialorder %v322, %v330
    %vm334 = vcmp.eq.f32.partialorder %v323, %v330
    %vm335 = vcmp.eq.f32.partialorder %v324, %v330
    %v336 = vsel %vm331, %v297, 640
    %v337 = vsel %vm332, %v298, 640
    %v338 = vsel %vm333, %v299, 640
    %v339 = vsel %vm334, %v300, 640
    %v340 = vsel %vm335, %v301, 640
    %vm341 = vcmp.lt.s32.totalorder %v336, %v340
    %v342 = vsel %vm341, %v336, %v340
    %vm343 = vcmp.lt.s32.totalorder %v342, %v337
    %v344 = vsel %vm343, %v342, %v337
    %vm345 = vcmp.lt.s32.totalorder %v338, %v339
    %v346 = vsel %vm345, %v338, %v339
    %vm347 = vcmp.lt.s32.totalorder %v344, %v346
    %v348 = vsel %vm347, %v344, %v346
    %v349 = vand.u32 %v348, 65535
    %v350 = vshra.s32 %v348, 16
    %v351 = vcvt.s32.f32 %v349
    %v352 = vcvt.s32.f32 %v350
    %353 = vmin.xlane.f32.xlu0 %v352
    %v354 = vpop.xlane.xlu0 %353
    %vm355 = vcmp.eq.f32.partialorder %v352, %v354
    %v356 = vsel %vm355, %v351, inf
    %357 = vmin.xlane.f32.xlu0 %v356
    %v358 = vpop.xlane.xlu0 %357
    %v359 = vcvt.f32.s32 %v358
    %v360 = vcvt.f32.s32 %v354
    %v361 = vshll.u32 %v360, 16
    %v362 = vadd.s32 %v361, %v359
    %vm363 = vcmp.eq.s32.totalorder %v297, %v362
    %vm364 = vcmp.eq.s32.totalorder %v298, %v362
    %vm365 = vcmp.eq.s32.totalorder %v299, %v362
    %vm366 = vcmp.eq.s32.totalorder %v300, %v362
    %vm367 = vcmp.eq.s32.totalorder %v301, %v362
    %v368 = vsel %vm363, 1, 0
    %v369 = vsel %vm364, 1, 0
    %v370 = vsel %vm365, 1, 0
    %v371 = vsel %vm366, 1, 0
    %v372 = vsel %vm367, 1, 0
    %v373 = vcvt.s32.f32 %v368
    %v374 = vcvt.s32.f32 %v369
    %v375 = vcvt.s32.f32 %v370
    %v376 = vcvt.s32.f32 %v371
    %v377 = vcvt.s32.f32 %v372
    %v378 = vld [vmem:[%s4] sm:$0xff]
    %v379 = vld [vmem:[%s4 + $0x8] sm:$0xff]
    %v380 = vld [vmem:[%s4 + $0x10] sm:$0xff]
    %v381 = vld [vmem:[%s4 + $0x18] sm:$0xff]
    %v382 = vld [vmem:[%s4 + $0x20] sm:$0xff]
    %v383 = vld [vmem:[%s4 + $0x28] sm:$0xff]
    %v384 = vld [vmem:[%s4 + $0x30] sm:$0xff]
    %v385 = vld [vmem:[%s4 + $0x38] sm:$0xff]
    %v386 = vld [vmem:[%s4 + $0x40] sm:$0xff]
    %v387 = vld [vmem:[%s4 + $0x48] sm:$0xff]
    %v388 = vld [vmem:[%s4 + $0x50] sm:$0xff]
    %v389 = vld [vmem:[%s4 + $0x58] sm:$0xff]
    %v390 = vld [vmem:[%s4 + $0x60] sm:$0xff]
    %v391 = vld [vmem:[%s4 + $0x68] sm:$0xff]
    %v392 = vld [vmem:[%s4 + $0x70] sm:$0xff]
    %v393 = vld [vmem:[%s4 + $0x78] sm:$0xff]
    %v394 = vld [vmem:[%s4 + $0x80] sm:$0xff]
    %v395 = vld [vmem:[%s4 + $0x88] sm:$0xff]
    %v396 = vld [vmem:[%s4 + $0x90] sm:$0xff]
    %v397 = vld [vmem:[%s4 + $0x98] sm:$0xff]
    %v398 = vld [vmem:[%s4 + $0xa0] sm:$0xff]
    %v399 = vld [vmem:[%s4 + $0xa8] sm:$0xff]
    %v400 = vld [vmem:[%s4 + $0xb0] sm:$0xff]
    %v401 = vld [vmem:[%s4 + $0xb8] sm:$0xff]
    %v402 = vld [vmem:[%s4 + $0xc0] sm:$0xff]
    %v403 = vld [vmem:[%s4 + $0xc8] sm:$0xff]
    %v404 = vld [vmem:[%s4 + $0xd0] sm:$0xff]
    %v405 = vld [vmem:[%s4 + $0xd8] sm:$0xff]
    %v406 = vld [vmem:[%s4 + $0xe0] sm:$0xff]
    %v407 = vld [vmem:[%s4 + $0xe8] sm:$0xff]
    %v408 = vld [vmem:[%s4 + $0xf0] sm:$0xff]
    %v409 = vld [vmem:[%s4 + $0xf8] sm:$0xff]
    %v410 = vld [vmem:[%s4 + $0x100] sm:$0xff]
    %v411 = vld [vmem:[%s4 + $0x108] sm:$0xff]
    %v412 = vld [vmem:[%s4 + $0x110] sm:$0xff]
    %v413 = vld [vmem:[%s4 + $0x118] sm:$0xff]
    %v414 = vld [vmem:[%s4 + $0x120] sm:$0xff]
    %v415 = vld [vmem:[%s4 + $0x128] sm:$0xff]
    %v416 = vld [vmem:[%s4 + $0x130] sm:$0xff]
    %v417 = vld [vmem:[%s4 + $0x138] sm:$0xff]
    %v418 = vld [vmem:[%s4 + $0x140] sm:$0xff]
    %v419 = vld [vmem:[%s4 + $0x148] sm:$0xff]
    %v420 = vld [vmem:[%s4 + $0x150] sm:$0xff]
    %v421 = vld [vmem:[%s4 + $0x158] sm:$0xff]
    %v422 = vld [vmem:[%s4 + $0x160] sm:$0xff]
    %v423 = vld [vmem:[%s4 + $0x168] sm:$0xff]
    %v424 = vld [vmem:[%s4 + $0x170] sm:$0xff]
    %v425 = vld [vmem:[%s4 + $0x178] sm:$0xff]
    %v426 = vld [vmem:[%s4 + $0x180] sm:$0xff]
    %v427 = vld [vmem:[%s4 + $0x188] sm:$0xff]
    %v428 = vld [vmem:[%s4 + $0x190] sm:$0xff]
    %v429 = vld [vmem:[%s4 + $0x198] sm:$0xff]
    %v430 = vld [vmem:[%s4 + $0x1a0] sm:$0xff]
    %v431 = vld [vmem:[%s4 + $0x1a8] sm:$0xff]
    %v432 = vld [vmem:[%s4 + $0x1b0] sm:$0xff]
    %v433 = vld [vmem:[%s4 + $0x1b8] sm:$0xff]
    %v434 = vld [vmem:[%s4 + $0x1c0] sm:$0xff]
    %v435 = vld [vmem:[%s4 + $0x1c8] sm:$0xff]
    %v436 = vld [vmem:[%s4 + $0x1d0] sm:$0xff]
    %v437 = vld [vmem:[%s4 + $0x1d8] sm:$0xff]
    %v438 = vld [vmem:[%s4 + $0x1e0] sm:$0xff]
    %v439 = vld [vmem:[%s4 + $0x1e8] sm:$0xff]
    %v440 = vld [vmem:[%s4 + $0x1f0] sm:$0xff]
    %v441 = vld [vmem:[%s4 + $0x1f8] sm:$0xff]
    %v442 = vld [vmem:[%s4 + $0x200] sm:$0xff]
    %v443 = vld [vmem:[%s4 + $0x208] sm:$0xff]
    %v444 = vld [vmem:[%s4 + $0x210] sm:$0xff]
    %v445 = vld [vmem:[%s4 + $0x218] sm:$0xff]
    %v446 = vld [vmem:[%s4 + $0x220] sm:$0xff]
    %v447 = vld [vmem:[%s4 + $0x228] sm:$0xff]
    %v448 = vld [vmem:[%s4 + $0x230] sm:$0xff]
    %v449 = vld [vmem:[%s4 + $0x238] sm:$0xff]
    %v450 = vld [vmem:[%s4 + $0x240] sm:$0xff]
    %v451 = vld [vmem:[%s4 + $0x248] sm:$0xff]
    %v452 = vld [vmem:[%s4 + $0x250] sm:$0xff]
    %v453 = vld [vmem:[%s4 + $0x258] sm:$0xff]
    %v454 = vld [vmem:[%s4 + $0x260] sm:$0xff]
    %v455 = vld [vmem:[%s4 + $0x268] sm:$0xff]
    %v456 = vld [vmem:[%s4 + $0x270] sm:$0xff]
    %v457 = vld [vmem:[%s4 + $0x278] sm:$0xff]
    %458 = vmatprep.subr.mxu0 0.0
    %459 = vmatpush1.msra.mxu0 %v393
    %460 = vmatprep.subr.mxu0 0.0
    %461 = vmatpush1.msra.mxu0 %v392
    %462 = vmatprep.subr.mxu0 0.0
    %463 = vmatpush1.msra.mxu0 %v391
    %464 = vmatprep.subr.mxu0 0.0
    %465 = vmatpush1.msra.mxu0 %v390
    %466 = vmatprep.subr.mxu0 0.0
    %467 = vmatpush1.msra.mxu0 %v389
    %468 = vmatprep.subr.mxu0 0.0
    %469 = vmatpush1.msra.mxu0 %v388
    %470 = vmatprep.subr.mxu0 0.0
    %471 = vmatpush1.msra.mxu0 %v387
    %472 = vmatprep.subr.mxu0 0.0
    %473 = vmatpush1.msra.mxu0 %v386
    %474 = vmatprep.subr.mxu0 0.0
    %475 = vmatpush1.msra.mxu0 %v385
    %476 = vmatprep.subr.mxu0 0.0
    %477 = vmatpush1.msra.mxu0 %v384
    %478 = vmatprep.subr.mxu0 0.0
    %479 = vmatpush1.msra.mxu0 %v383
    %480 = vmatprep.subr.mxu0 0.0
    %481 = vmatpush1.msra.mxu0 %v382
    %482 = vmatprep.subr.mxu0 0.0
    %483 = vmatpush1.msra.mxu0 %v381
    %484 = vmatprep.subr.mxu0 0.0
    %485 = vmatpush1.msra.mxu0 %v380
    %486 = vmatprep.subr.mxu0 0.0
    %487 = vmatpush1.msra.mxu0 %v379
    %488 = vmatprep.subr.mxu0 0.0
    %489 = vmatpush1.msra.mxu0 %v378
    %490 = vmatprep.subr.mxu0 0.0
    %491 = vmatpush2.msra.mxu0 %v409
    %492 = vmatprep.subr.mxu0 0.0
    %493 = vmatpush2.msra.mxu0 %v408
    %494 = vmatprep.subr.mxu0 0.0
    %495 = vmatpush2.msra.mxu0 %v407
    %496 = vmatprep.subr.mxu0 0.0
    %497 = vmatpush2.msra.mxu0 %v406
    %498 = vmatprep.subr.mxu0 0.0
    %499 = vmatpush2.msra.mxu0 %v405
    %500 = vmatprep.subr.mxu0 0.0
    %501 = vmatpush2.msra.mxu0 %v404
    %502 = vmatprep.subr.mxu0 0.0
    %503 = vmatpush2.msra.mxu0 %v403
    %504 = vmatprep.subr.mxu0 0.0
    %505 = vmatpush2.msra.mxu0 %v402
    %506 = vmatprep.subr.mxu0 0.0
    %507 = vmatpush2.msra.mxu0 %v401
    %508 = vmatprep.subr.mxu0 0.0
    %509 = vmatpush2.msra.mxu0 %v400
    %510 = vmatprep.subr.mxu0 0.0
    %511 = vmatpush2.msra.mxu0 %v399
    %512 = vmatprep.subr.mxu0 0.0
    %513 = vmatpush2.msra.mxu0 %v398
    %514 = vmatprep.subr.mxu0 0.0
    %515 = vmatpush2.msra.mxu0 %v397
    %516 = vmatprep.subr.mxu0 0.0
    %517 = vmatpush2.msra.mxu0 %v396
    %518 = vmatprep.subr.mxu0 0.0
    %519 = vmatpush2.msra.mxu0 %v395
    %520 = vmatprep.subr.mxu0 0.0
    %521 = vmatpush2.msra.mxu0 %v394
    %522 = vmatprep.mubr.f32.mxu0 %v374
    %523 = vmatmul.mubr.f32.gmra.mxu0 %v373
    %v524 = vpop.f32.mrf.mxu0
    %v525 = vadd.f32 0.0, %v524
    %v526 = vpop.f32.mrf.mxu0
    %527 = vdwg.mxu0
    %528 = vmatprep.subr.mxu0 0.0
    %529 = vmatpush1.msra.mxu0 %v425
    %530 = vmatprep.subr.mxu0 0.0
    %531 = vmatpush1.msra.mxu0 %v424
    %532 = vmatprep.subr.mxu0 0.0
    %533 = vmatpush1.msra.mxu0 %v423
    %534 = vmatprep.subr.mxu0 0.0
    %535 = vmatpush1.msra.mxu0 %v422
    %536 = vmatprep.subr.mxu0 0.0
    %537 = vmatpush1.msra.mxu0 %v421
    %538 = vmatprep.subr.mxu0 0.0
    %539 = vmatpush1.msra.mxu0 %v420
    %540 = vmatprep.subr.mxu0 0.0
    %541 = vmatpush1.msra.mxu0 %v419
    %542 = vmatprep.subr.mxu0 0.0
    %543 = vmatpush1.msra.mxu0 %v418
    %544 = vmatprep.subr.mxu0 0.0
    %545 = vmatpush1.msra.mxu0 %v417
    %546 = vmatprep.subr.mxu0 0.0
    %547 = vmatpush1.msra.mxu0 %v416
    %548 = vmatprep.subr.mxu0 0.0
    %549 = vmatpush1.msra.mxu0 %v415
    %550 = vmatprep.subr.mxu0 0.0
    %551 = vmatpush1.msra.mxu0 %v414
    %552 = vmatprep.subr.mxu0 0.0
    %553 = vmatpush1.msra.mxu0 %v413
    %554 = vmatprep.subr.mxu0 0.0
    %555 = vmatpush1.msra.mxu0 %v412
    %556 = vmatprep.subr.mxu0 0.0
    %557 = vmatpush1.msra.mxu0 %v411
    %558 = vmatprep.subr.mxu0 0.0
    %559 = vmatpush1.msra.mxu0 %v410
    %560 = vmatprep.subr.mxu0 0.0
    %561 = vmatpush2.msra.mxu0 %v441
    %562 = vmatprep.subr.mxu0 0.0
    %563 = vmatpush2.msra.mxu0 %v440
    %564 = vmatprep.subr.mxu0 0.0
    %565 = vmatpush2.msra.mxu0 %v439
    %566 = vmatprep.subr.mxu0 0.0
    %567 = vmatpush2.msra.mxu0 %v438
    %568 = vmatprep.subr.mxu0 0.0
    %569 = vmatpush2.msra.mxu0 %v437
    %570 = vmatprep.subr.mxu0 0.0
    %571 = vmatpush2.msra.mxu0 %v436
    %572 = vmatprep.subr.mxu0 0.0
    %573 = vmatpush2.msra.mxu0 %v435
    %574 = vmatprep.subr.mxu0 0.0
    %575 = vmatpush2.msra.mxu0 %v434
    %576 = vmatprep.subr.mxu0 0.0
    %577 = vmatpush2.msra.mxu0 %v433
    %578 = vmatprep.subr.mxu0 0.0
    %579 = vmatpush2.msra.mxu0 %v432
    %580 = vmatprep.subr.mxu0 0.0
    %581 = vmatpush2.msra.mxu0 %v431
    %582 = vmatprep.subr.mxu0 0.0
    %583 = vmatpush2.msra.mxu0 %v430
    %584 = vmatprep.subr.mxu0 0.0
    %585 = vmatpush2.msra.mxu0 %v429
    %586 = vmatprep.subr.mxu0 0.0
    %587 = vmatpush2.msra.mxu0 %v428
    %588 = vmatprep.subr.mxu0 0.0
    %589 = vmatpush2.msra.mxu0 %v427
    %590 = vmatprep.subr.mxu0 0.0
    %591 = vmatpush2.msra.mxu0 %v426
    %592 = vmatprep.mubr.f32.mxu0 %v376
    %593 = vmatmul.mubr.f32.gmra.mxu0 %v375
    %v594 = vpop.f32.mrf.mxu0
    %v595 = vadd.f32 %v525, %v594
    %v596 = vpop.f32.mrf.mxu0
    %597 = vdwg.mxu0
    %598 = vmatprep.subr.mxu0 0.0
    %599 = vmatpush1.msra.mxu0 %v457
    %600 = vmatprep.subr.mxu0 0.0
    %601 = vmatpush1.msra.mxu0 %v456
    %602 = vmatprep.subr.mxu0 0.0
    %603 = vmatpush1.msra.mxu0 %v455
    %604 = vmatprep.subr.mxu0 0.0
    %605 = vmatpush1.msra.mxu0 %v454
    %606 = vmatprep.subr.mxu0 0.0
    %607 = vmatpush1.msra.mxu0 %v453
    %608 = vmatprep.subr.mxu0 0.0
    %609 = vmatpush1.msra.mxu0 %v452
    %610 = vmatprep.subr.mxu0 0.0
    %611 = vmatpush1.msra.mxu0 %v451
    %612 = vmatprep.subr.mxu0 0.0
    %613 = vmatpush1.msra.mxu0 %v450
    %614 = vmatprep.subr.mxu0 0.0
    %615 = vmatpush1.msra.mxu0 %v449
    %616 = vmatprep.subr.mxu0 0.0
    %617 = vmatpush1.msra.mxu0 %v448
    %618 = vmatprep.subr.mxu0 0.0
    %619 = vmatpush1.msra.mxu0 %v447
    %620 = vmatprep.subr.mxu0 0.0
    %621 = vmatpush1.msra.mxu0 %v446
    %622 = vmatprep.subr.mxu0 0.0
    %623 = vmatpush1.msra.mxu0 %v445
    %624 = vmatprep.subr.mxu0 0.0
    %625 = vmatpush1.msra.mxu0 %v444
    %626 = vmatprep.subr.mxu0 0.0
    %627 = vmatpush1.msra.mxu0 %v443
    %628 = vmatprep.subr.mxu0 0.0
    %629 = vmatpush1.msra.mxu0 %v442
    %630 = vmatprep.subr.mxu0 0.0
    %631 = vmatpush2.msra.mxu0 0.0
    %632 = vmatprep.subr.mxu0 0.0
    %633 = vmatpush2.msra.mxu0 0.0
    %634 = vmatprep.subr.mxu0 0.0
    %635 = vmatpush2.msra.mxu0 0.0
    %636 = vmatprep.subr.mxu0 0.0
    %637 = vmatpush2.msra.mxu0 0.0
    %638 = vmatprep.subr.mxu0 0.0
    %639 = vmatpush2.msra.mxu0 0.0
    %640 = vmatprep.subr.mxu0 0.0
    %641 = vmatpush2.msra.mxu0 0.0
    %642 = vmatprep.subr.mxu0 0.0
    %643 = vmatpush2.msra.mxu0 0.0
    %644 = vmatprep.subr.mxu0 0.0
    %645 = vmatpush2.msra.mxu0 0.0
    %646 = vmatprep.subr.mxu0 0.0
    %647 = vmatpush2.msra.mxu0 0.0
    %648 = vmatprep.subr.mxu0 0.0
    %649 = vmatpush2.msra.mxu0 0.0
    %650 = vmatprep.subr.mxu0 0.0
    %651 = vmatpush2.msra.mxu0 0.0
    %652 = vmatprep.subr.mxu0 0.0
    %653 = vmatpush2.msra.mxu0 0.0
    %654 = vmatprep.subr.mxu0 0.0
    %655 = vmatpush2.msra.mxu0 0.0
    %656 = vmatprep.subr.mxu0 0.0
    %657 = vmatpush2.msra.mxu0 0.0
    %658 = vmatprep.subr.mxu0 0.0
    %659 = vmatpush2.msra.mxu0 0.0
    %660 = vmatprep.subr.mxu0 0.0
    %661 = vmatpush2.msra.mxu0 0.0
    %662 = vmatprep.mubr.f32.mxu0 0.0
    %663 = vmatmul.mubr.f32.gmra.mxu0 %v377
    %v664 = vpop.f32.mrf.mxu0
    %v665 = vadd.f32 %v595, %v664
    %v666 = vpop.f32.mrf.mxu0
    %667 = vdwg.mxu0
    %668 = vst.msk [vmem:[#allocation2] sm:$0xff] %vm48, %v665
    %v669 = vlaneseq
    %v670 = vshrl.u32 %v669, 7
    %s671 = smul.u32 0, 8
    %v672 = vstv %s671
    %v673 = vadd.s32 %v670, %v672
    %vm674 = vcmp.lt.s32.totalorder %v673, 8
    %v675 = vsel %vm674, 1, 0
    %v676 = vcvt.s32.f32 %v675
    %v677 = vsub.f32 %v665, %v27
    %v678 = vmul.f32 %v677, %v676
    %v679 = vmul.f32 %v678, %v678
    %v680 = vsel %vm48, %v679, 0.0
    %681 = vadd.xlane.f32.xlu0 %v680
    %v682 = vpop.xlane.xlu0 %681
    %v683 = vrot.slane %v682, 4
    %v684 = vadd.f32 %v682, %v683
    %v685 = vrot.slane %v684, 2
    %v686 = vadd.f32 %v684, %v685
    %v687 = vrot.slane %v686, 1
    %v688 = vadd.f32 %v686, %v687
    %s689 = vtos %v688
    %v690 = vstv %s689
    %v691 = vadd.f32 %v690, 0.0
    %692 = vst [vmem:[#allocation4] sm:$0xff] %v691
    // Predicated region
    $region26: #{tpu_custom_call.1} parent=1 // pred_check
      _
    $region27: #{tpu_custom_call.1} parent=1 // pred_check_branch
      %694 = sbr.rel (0) target = $region29
    $region28: #{tpu_custom_call.1} parent=1 // pred_region
      %s696 = ssub.s32 128, 128
      %697 = vsyncadd [#allocation3], %s696
      %s699 = sshll.u32 [#allocation2], 4
      %s700 = int_to_ptr.vmem [resolvable:$true] %s699
      %702 = dma.vmem_to_hbm [thread:$0]  %s700, 128, %s6, [#allocation3]
    $region29: #{tpu_custom_call.1} parent=1 // pred_fallthru
      _
    // Predicated region
    $region30: #{tpu_custom_call.1} parent=1 // pred_check
      _
    $region31: #{tpu_custom_call.1} parent=1 // pred_check_branch
      %704 = sbr.rel (0) target = $region33
    $region32: #{tpu_custom_call.1} parent=1 // pred_region
      %s706 = ssub.s32 128, 128
      %707 = vsyncadd [#allocation5], %s706
      %s709 = sshll.u32 [#allocation4], 4
      %s710 = int_to_ptr.vmem [resolvable:$true] %s709
      %712 = dma.vmem_to_hbm [thread:$0]  %s710, 128, %s7, [#allocation5]
    $region33: #{tpu_custom_call.1} parent=1 // pred_fallthru
      _
    // Predicated region
    $region34: #{tpu_custom_call.1} parent=1 // pred_check
      _
    $region35: #{tpu_custom_call.1} parent=1 // pred_check_branch
      %714 = sbr.rel (0) target = $region37
    $region36: #{tpu_custom_call.1} parent=1 // pred_region
      %715 = dma.done [#allocation3], 128
    $region37: #{tpu_custom_call.1} parent=1 // pred_fallthru
      _
    // Predicated region
    $region38: #{tpu_custom_call.1} parent=1 // pred_check
      _
    $region39: #{tpu_custom_call.1} parent=1 // pred_check_branch
      %717 = sbr.rel (0) target = $region41
    $region40: #{tpu_custom_call.1} parent=1 // pred_region
      %718 = dma.done [#allocation5], 128
    $region41: #{tpu_custom_call.1} parent=1 // pred_fallthru
      _
    %719 = vsyncpa [#allocation3], 1
    %720 = vsyncpa [#allocation5], 1

</llo_original>
